<compile_context>
chip_gen: v7x
topology: tpu7x:2x2x1
jax: 0.10.0
libtpu: 0.0.40
codegen_flags: <defaults>
</compile_context>

<pallas_src>
import functools
import math

import jax
import jax.numpy as jnp
from jax.experimental import pallas as pl
from jax.experimental.pallas import tpu as pltpu


def _round_up(n, m):
    return -(-n // m) * m


def _pcnn_kernel(x_ref, m_ref, w_ref, b_ref, o_ref, *, chunk):
    # x_ref: (TB, Lp, Cin)  bf16; Lp = pad + La + pad, zero halo + zero tail rows
    # m_ref: (TB, La, 1)    int8 piece ids in {0,1,2,3}; padded tail rows are 0
    # w_ref: (K, Cin, Fp)   bf16; w_ref[t, c, f] == torch_conv_weight[f, c, t]
    # b_ref: (1, Fp)        f32 conv bias (zero in the padded filter columns)
    # o_ref: (3, TB, Fp)    f32 tanh(piecewise max + bias), piece-major
    TB, Lp, Cin = x_ref.shape
    K, _, Fp = w_ref.shape
    La = m_ref.shape[1]
    NEG = jnp.float32(-1e30)

    w = w_ref[...]                                    # (K, Cin, Fp) bf16, hoisted
    m = m_ref[...].astype(jnp.int32)                  # (TB, La, 1)  i32, hoisted

    pooled = [jnp.full((TB, Fp), NEG, jnp.float32) for _ in range(3)]

    # Single pass over the sequence: per chunk, K tap-accumulated MXU matmuls
    # (bf16 in, f32 acc), then update the three running piece maxima while the
    # chunk is still hot — no full-length f32 conv tensor is ever materialized.
    for base in range(0, La, chunk):
        y = None
        for t in range(K):
            xt = x_ref[:, base + t: base + t + chunk, :]           # (TB, CH, Cin) bf16
            z = jnp.dot(xt.reshape(TB * chunk, Cin), w[t],
                        preferred_element_type=jnp.float32)         # (TB*CH, Fp) f32
            y = z if y is None else y + z
        y = y.reshape(TB, chunk, Fp)
        mc = m[:, base: base + chunk, :]                            # (TB, CH, 1)
        for p in range(3):
            sel = jnp.where(mc == p + 1, y, NEG)                    # select, no +100 add
            pooled[p] = jnp.maximum(pooled[p], jnp.max(sel, axis=1))

    b = b_ref[...]                                                  # (1, Fp) f32
    for p in range(3):
        # Bias folded in after the max (max(y + b) == max(y) + b).  Empty pieces stay
        # at -1e30 -> tanh == -1, matching torch's tanh(max - 100) ~= -1 in f32.
        o_ref[p] = jnp.tanh(pooled[p] + b)                          # dense (TB, Fp) store


def _pick_batch_tile(B, Lp, La, Cin, Fp, K, chunk, budget_bytes):
    """Largest batch tile whose x2-buffered blocks + in-kernel temporaries fit the
    VMEM budget, capped so large batches keep >= 4 grid steps (v7x: 2 TCs)."""
    lane = lambda n: _round_up(n, 128)
    x_blk = _round_up(Lp, 16) * lane(Cin) * 2        # bf16 input block
    m_blk = _round_up(La, 32) * lane(1) * 1          # int8 mask block
    o_blk = 3 * Fp * 4                               # f32 output block rows
    tmp = (_round_up(La, 8) * lane(1) * 4            # in-kernel i32 mask copy
           + chunk * lane(Cin) * 2                   # shifted tap chunk (bf16)
           + 2 * chunk * Fp * 4                      # y + where() chunk temporaries
           + 3 * Fp * 4)                             # running piece maxima
    per = 2 * (x_blk + m_blk + o_blk) + tmp          # x2 = double-buffered pipeline blocks
    const = 2 * (K * _round_up(Cin, 16) * Fp * 2 + 8 * Fp * 4)   # weight + bias blocks
    avail = max(budget_bytes - const, 1 << 20)

    tb = max(1, min(B, 512, avail // max(per, 1)))
    if B >= 32:                                      # keep >= 4 grid steps when possible
        tb = min(tb, -(-B // 4))
    if tb < B:
        # A batch-tiled out block has last-two dims (TB, Fp): TB must be 8-aligned.
        # Round DOWN when >= 8; if the VMEM-derived bound is < 8 we still need 8 for
        # block legality (budget has >10 MiB headroom vs. the scoped limit).
        tb = tb - tb % 8 if tb >= 8 else min(8, B)
    return max(1, min(tb, B))


def piecewise_cnn_forward(input_rep, mask, weight, bias, kernel_size, *,
                          piece_major=False):
    """PiecewiseCNN.forward (eval mode).

    input_rep: (B, L, Cin) f32.  mask: (B, L) int in {0,1,2,3}.
    weight: (K, Cin, F) with weight[t, c, f] == torch_conv_weight[f, c, t].  bias: (F,).
    Returns (B, F*3) f32 in torch's (B, F, 3).view(B, -1) ordering, or piece-major
    [p*F + f] ordering (skips the lane-unfriendly final transpose) if piece_major=True.
    """
    B, L, Cin = input_rep.shape
    K = kernel_size
    F = weight.shape[2]
    pad = (K - 1) // 2
    assert L + 2 * pad - K + 1 == L, "use an odd kernel_size (torch L_out must equal L)"

    # Wrapper-side sequence padding (a few zero rows per sequence): `pad` halo rows on
    # each side plus a zero tail rounding the pooled length La up to a multiple of 16
    # (free bf16 sublane relabels) and of the kernel's L-chunk.  Tail rows carry mask 0
    # so they never win a piece max.
    La = _round_up(L, 16)
    chunk = next(c for c in (64, 32, 16) if La % c == 0)
    Lp = La + 2 * pad
    Fp = _round_up(F, 128)                            # lane-dense MXU N / output stores

    TB = _pick_batch_tile(B, Lp, La, Cin, Fp, K, chunk, budget_bytes=20 << 20)
    Bp = _round_up(B, TB)

    xb = jnp.pad(input_rep.astype(jnp.bfloat16),
                 ((0, Bp - B), (pad, pad + La - L), (0, 0)))        # (Bp, Lp, Cin)
    mb = jnp.pad(mask.astype(jnp.int8)[:, :, None],
                 ((0, Bp - B), (0, La - L), (0, 0)))                # (Bp, La, 1)
    wb = jnp.pad(weight, ((0, 0), (0, 0), (0, Fp - F))).astype(jnp.bfloat16)
    bb = jnp.pad(bias.astype(jnp.float32), (0, Fp - F)).reshape(1, Fp)

    out = pl.pallas_call(
        functools.partial(_pcnn_kernel, chunk=chunk),
        out_shape=jax.ShapeDtypeStruct((3, Bp, Fp), jnp.float32),
        grid_spec=pltpu.PrefetchScalarGridSpec(
            num_scalar_prefetch=0,
            grid=(Bp // TB,),
            in_specs=[
                pl.BlockSpec((TB, Lp, Cin), lambda i: (i, 0, 0)),
                pl.BlockSpec((TB, La, 1), lambda i: (i, 0, 0)),
                pl.BlockSpec((K, Cin, Fp), lambda i: (0, 0, 0)),
                pl.BlockSpec((1, Fp), lambda i: (0, 0)),
            ],
            out_specs=pl.BlockSpec((3, TB, Fp), lambda i: (0, i, 0)),
        ),
        compiler_params=pltpu.CompilerParams(
            dimension_semantics=("parallel",),        # batch tiles shard over TCs (v7x)
            vmem_limit_bytes=32 * 1024 * 1024,        # safe on v5e/v6e/v7x; > 20 MiB budget
        ),
    )(xb, mb, wb, bb)

    # NOTE: padded batch rows / padded filter columns of the raw (3, Bp, Fp) output are
    # garbage (tanh of -1e30 / 0) — always slice before consuming.
    out = out[:, :B, :F]                              # (3, B, F)
    if piece_major:
        return jnp.transpose(out, (1, 0, 2)).reshape(B, 3 * F)       # [p*F + f]
    # torch ordering: (B, F, 3).view(B, -1)  -> column index f*3 + p
    return jnp.transpose(out, (1, 2, 0)).reshape(B, 3 * F)


def _reference(input_rep, mask, weight, bias, kernel_size):
    """Pure-JAX replica of the PyTorch forward (eval mode, +100 mask-embedding trick),
    with the same bf16 MXU feed / f32 accumulation as the kernel."""
    B, L, Cin = input_rep.shape
    K = kernel_size
    F = weight.shape[2]
    pad = (K - 1) // 2
    xb = input_rep.astype(jnp.bfloat16)
    wb = weight.astype(jnp.bfloat16)
    x_pad = jnp.pad(xb, ((0, 0), (pad, pad), (0, 0)))
    y = jnp.zeros((B, L, F), jnp.float32)
    for t in range(K):
        y = y + jnp.einsum('blc,cf->blf', x_pad[:, t:t + L, :], wb[t],
                           preferred_element_type=jnp.float32)
    y = y + bias
    tbl = jnp.array([[0, 0, 0], [100, 0, 0], [0, 100, 0], [0, 0, 100]], jnp.float32)
    emb = tbl[mask]                                          # (B, L, 3)
    z = y[:, :, :, None] + emb[:, :, None, :]                # (B, L, F, 3)
    z = jnp.max(z, axis=1) - 100.0                           # (B, F, 3)
    return jnp.tanh(z.reshape(B, -1))


if __name__ == "__main__":
    B, L, Cin, F, K = 2, 16, 8, 32, 3    # batch, seq, in_channels, num_filters, kernel_size

    key = jax.random.PRNGKey(0)
    k_x, k_m, k_w, k_b = jax.random.split(key, 4)

    x = jax.random.normal(k_x, (B, L, Cin), jnp.float32)
    mask = jax.random.randint(k_m, (B, L), 0, 4, jnp.int32)

    # Deterministic Conv1d parameter init (shapes from nn.Conv1d(Cin, F, K)).
    bound = 1.0 / math.sqrt(Cin * K)
    weight = jax.random.uniform(k_w, (K, Cin, F), jnp.float32, -bound, bound)
    bias = jax.random.uniform(k_b, (F,), jnp.float32, -bound, bound)

    out = jax.block_until_ready(piecewise_cnn_forward(x, mask, weight, bias, K))
    ref = _reference(x, mask, weight, bias, K)

    assert out.shape == (B, 3 * F), out.shape
    max_err = float(jnp.max(jnp.abs(out - ref)))
    assert jnp.allclose(out, ref, atol=2e-4, rtol=2e-4), max_err
    print("KERNEL_OK")
</pallas_src>

<mosaic_0001>
module attributes {stable_mosaic.version = 11 : i64} {
  func.func @_pcnn_kernel(%arg0: i32, %arg1: memref<2x18x8xbf16, #tpu.memory_space<vmem>>, %arg2: memref<2x16x1xi8, #tpu.memory_space<vmem>>, %arg3: memref<3x8x128xbf16, #tpu.memory_space<vmem>>, %arg4: memref<1x128xf32, #tpu.memory_space<vmem>>, %arg5: memref<3x2x128xf32, #tpu.memory_space<vmem>>) attributes {dimension_semantics = [#tpu.dimension_semantics<parallel>], iteration_bounds = array<i64: 1>, scalar_prefetch = 0 : i64, scratch_operands = 0 : i64, tpu.core_type = #tpu.core_type<tc>, window_params = [{transform_indices = @transform_0, window_bounds = array<i64: 2, 18, 8>}, {transform_indices = @transform_1, window_bounds = array<i64: 2, 16, 1>}, {pipeline_mode = #tpu.pipeline_mode<synchronous>, transform_indices = @transform_2, window_bounds = array<i64: 3, 8, 128>}, {pipeline_mode = #tpu.pipeline_mode<synchronous>, transform_indices = @transform_3, window_bounds = array<i64: 1, 128>}, {transform_indices = @transform_4, window_bounds = array<i64: 3, 2, 128>}]} {
    %c0 = arith.constant 0 : index
    %c0_0 = arith.constant 0 : index
    %c0_1 = arith.constant 0 : index
    %0 = vector.load %arg3[%c0, %c0_0, %c0_1] : memref<3x8x128xbf16, #tpu.memory_space<vmem>>, vector<3x8x128xbf16>
    %c0_2 = arith.constant 0 : index
    %c0_3 = arith.constant 0 : index
    %c0_4 = arith.constant 0 : index
    %1 = vector.load %arg2[%c0_2, %c0_3, %c0_4] : memref<2x16x1xi8, #tpu.memory_space<vmem>>, vector<2x16x1xi8>
    %2 = arith.extsi %1 : vector<2x16x1xi8> to vector<2x16x1xi32>
    %cst = arith.constant -1.000000e+30 : f32
    %3 = vector.broadcast %cst : f32 to vector<2x128xf32>
    %cst_5 = arith.constant -1.000000e+30 : f32
    %4 = vector.broadcast %cst_5 : f32 to vector<2x128xf32>
    %cst_6 = arith.constant -1.000000e+30 : f32
    %5 = vector.broadcast %cst_6 : f32 to vector<2x128xf32>
    %c0_7 = arith.constant 0 : index
    %c0_8 = arith.constant 0 : index
    %c0_9 = arith.constant 0 : index
    %6 = vector.load %arg1[%c0_7, %c0_8, %c0_9] : memref<2x18x8xbf16, #tpu.memory_space<vmem>>, vector<2x16x8xbf16>
    %7 = vector.shape_cast %6 : vector<2x16x8xbf16> to vector<32x8xbf16>
    %8 = vector.extract_strided_slice %0 {offsets = [0, 0, 0], sizes = [1, 8, 128], strides = [1, 1, 1]} : vector<3x8x128xbf16> to vector<1x8x128xbf16>
    %9 = vector.shape_cast %8 : vector<1x8x128xbf16> to vector<8x128xbf16>
    %cst_10 = arith.constant dense<0.000000e+00> : vector<32x128xf32>
    %10 = tpu.matmul %7, %9, %cst_10 {dimension_numbers = #tpu.dot_dimension_numbers<[1], [0], [0], [1], [0, 0, 1, 1], [], []>} : vector<32x8xbf16>, vector<8x128xbf16>, vector<32x128xf32> -> vector<32x128xf32>
    %c0_11 = arith.constant 0 : index
    %c1 = arith.constant 1 : index
    %c0_12 = arith.constant 0 : index
    %11 = vector.load %arg1[%c0_11, %c1, %c0_12] : memref<2x18x8xbf16, #tpu.memory_space<vmem>>, vector<2x16x8xbf16>
    %12 = vector.shape_cast %11 : vector<2x16x8xbf16> to vector<32x8xbf16>
    %13 = vector.extract_strided_slice %0 {offsets = [1, 0, 0], sizes = [1, 8, 128], strides = [1, 1, 1]} : vector<3x8x128xbf16> to vector<1x8x128xbf16>
    %14 = vector.shape_cast %13 : vector<1x8x128xbf16> to vector<8x128xbf16>
    %cst_13 = arith.constant dense<0.000000e+00> : vector<32x128xf32>
    %15 = tpu.matmul %12, %14, %cst_13 {dimension_numbers = #tpu.dot_dimension_numbers<[1], [0], [0], [1], [0, 0, 1, 1], [], []>} : vector<32x8xbf16>, vector<8x128xbf16>, vector<32x128xf32> -> vector<32x128xf32>
    %16 = arith.addf %10, %15 : vector<32x128xf32>
    %c0_14 = arith.constant 0 : index
    %c2 = arith.constant 2 : index
    %c0_15 = arith.constant 0 : index
    %17 = vector.load %arg1[%c0_14, %c2, %c0_15] : memref<2x18x8xbf16, #tpu.memory_space<vmem>>, vector<2x16x8xbf16>
    %18 = vector.shape_cast %17 : vector<2x16x8xbf16> to vector<32x8xbf16>
    %19 = vector.extract_strided_slice %0 {offsets = [2, 0, 0], sizes = [1, 8, 128], strides = [1, 1, 1]} : vector<3x8x128xbf16> to vector<1x8x128xbf16>
    %20 = vector.shape_cast %19 : vector<1x8x128xbf16> to vector<8x128xbf16>
    %cst_16 = arith.constant dense<0.000000e+00> : vector<32x128xf32>
    %21 = tpu.matmul %18, %20, %cst_16 {dimension_numbers = #tpu.dot_dimension_numbers<[1], [0], [0], [1], [0, 0, 1, 1], [], []>} : vector<32x8xbf16>, vector<8x128xbf16>, vector<32x128xf32> -> vector<32x128xf32>
    %22 = arith.addf %16, %21 : vector<32x128xf32>
    %23 = vector.shape_cast %22 : vector<32x128xf32> to vector<2x16x128xf32>
    %c1_i32 = arith.constant 1 : i32
    %24 = vector.broadcast %c1_i32 : i32 to vector<2x16x1xi32>
    %25 = arith.cmpi eq, %2, %24 : vector<2x16x1xi32>
    %cst_17 = arith.constant -1.000000e+30 : f32
    %26 = vector.shape_cast %25 : vector<2x16x1xi1> to vector<2x16x1xi1>
    %27 = vector.broadcast %26 : vector<2x16x1xi1> to vector<2x16x128xi1>
    %28 = vector.broadcast %cst_17 : f32 to vector<2x16x128xf32>
    %29 = arith.select %27, %23, %28 : vector<2x16x128xi1>, vector<2x16x128xf32>
    %cst_18 = arith.constant dense<0xFF800000> : vector<2x128xf32>
    %30 = vector.multi_reduction <maximumf>, %29, %cst_18 [1] : vector<2x16x128xf32> to vector<2x128xf32>
    %31 = arith.maximumf %3, %30 : vector<2x128xf32>
    %c2_i32 = arith.constant 2 : i32
    %32 = vector.broadcast %c2_i32 : i32 to vector<2x16x1xi32>
    %33 = arith.cmpi eq, %2, %32 : vector<2x16x1xi32>
    %cst_19 = arith.constant -1.000000e+30 : f32
    %34 = vector.shape_cast %33 : vector<2x16x1xi1> to vector<2x16x1xi1>
    %35 = vector.broadcast %34 : vector<2x16x1xi1> to vector<2x16x128xi1>
    %36 = vector.broadcast %cst_19 : f32 to vector<2x16x128xf32>
    %37 = arith.select %35, %23, %36 : vector<2x16x128xi1>, vector<2x16x128xf32>
    %cst_20 = arith.constant dense<0xFF800000> : vector<2x128xf32>
    %38 = vector.multi_reduction <maximumf>, %37, %cst_20 [1] : vector<2x16x128xf32> to vector<2x128xf32>
    %39 = arith.maximumf %4, %38 : vector<2x128xf32>
    %c3_i32 = arith.constant 3 : i32
    %40 = vector.broadcast %c3_i32 : i32 to vector<2x16x1xi32>
    %41 = arith.cmpi eq, %2, %40 : vector<2x16x1xi32>
    %cst_21 = arith.constant -1.000000e+30 : f32
    %42 = vector.shape_cast %41 : vector<2x16x1xi1> to vector<2x16x1xi1>
    %43 = vector.broadcast %42 : vector<2x16x1xi1> to vector<2x16x128xi1>
    %44 = vector.broadcast %cst_21 : f32 to vector<2x16x128xf32>
    %45 = arith.select %43, %23, %44 : vector<2x16x128xi1>, vector<2x16x128xf32>
    %cst_22 = arith.constant dense<0xFF800000> : vector<2x128xf32>
    %46 = vector.multi_reduction <maximumf>, %45, %cst_22 [1] : vector<2x16x128xf32> to vector<2x128xf32>
    %47 = arith.maximumf %5, %46 : vector<2x128xf32>
    %c0_23 = arith.constant 0 : index
    %c0_24 = arith.constant 0 : index
    %48 = vector.load %arg4[%c0_23, %c0_24] : memref<1x128xf32, #tpu.memory_space<vmem>>, vector<1x128xf32>
    %49 = vector.broadcast %48 : vector<1x128xf32> to vector<2x128xf32>
    %50 = arith.addf %31, %49 : vector<2x128xf32>
    %51 = math.tanh %50 : vector<2x128xf32>
    %c0_25 = arith.constant 0 : index
    %c0_26 = arith.constant 0 : index
    %c0_27 = arith.constant 0 : index
    %52 = vector.load %arg5[%c0_25, %c0_26, %c0_27] : memref<3x2x128xf32, #tpu.memory_space<vmem>>, vector<1x2x128xf32>
    %53 = vector.shape_cast %52 : vector<1x2x128xf32> to vector<2x128xf32>
    %54 = vector.shape_cast %51 : vector<2x128xf32> to vector<1x2x128xf32>
    tpu.vector_store %arg5[%c0_25, %c0_26, %c0_27], %54 {strides = array<i32>} : memref<3x2x128xf32, #tpu.memory_space<vmem>>, vector<1x2x128xf32>,
    %55 = vector.broadcast %48 : vector<1x128xf32> to vector<2x128xf32>
    %56 = arith.addf %39, %55 : vector<2x128xf32>
    %57 = math.tanh %56 : vector<2x128xf32>
    %c1_28 = arith.constant 1 : index
    %c0_29 = arith.constant 0 : index
    %c0_30 = arith.constant 0 : index
    %58 = vector.load %arg5[%c1_28, %c0_29, %c0_30] : memref<3x2x128xf32, #tpu.memory_space<vmem>>, vector<1x2x128xf32>
    %59 = vector.shape_cast %58 : vector<1x2x128xf32> to vector<2x128xf32>
    %60 = vector.shape_cast %57 : vector<2x128xf32> to vector<1x2x128xf32>
    tpu.vector_store %arg5[%c1_28, %c0_29, %c0_30], %60 {strides = array<i32>} : memref<3x2x128xf32, #tpu.memory_space<vmem>>, vector<1x2x128xf32>,
    %61 = vector.broadcast %48 : vector<1x128xf32> to vector<2x128xf32>
    %62 = arith.addf %47, %61 : vector<2x128xf32>
    %63 = math.tanh %62 : vector<2x128xf32>
    %c2_31 = arith.constant 2 : index
    %c0_32 = arith.constant 0 : index
    %c0_33 = arith.constant 0 : index
    %64 = vector.load %arg5[%c2_31, %c0_32, %c0_33] : memref<3x2x128xf32, #tpu.memory_space<vmem>>, vector<1x2x128xf32>
    %65 = vector.shape_cast %64 : vector<1x2x128xf32> to vector<2x128xf32>
    %66 = vector.shape_cast %63 : vector<2x128xf32> to vector<1x2x128xf32>
    tpu.vector_store %arg5[%c2_31, %c0_32, %c0_33], %66 {strides = array<i32>} : memref<3x2x128xf32, #tpu.memory_space<vmem>>, vector<1x2x128xf32>,
    return
  }
  func.func @transform_0(%arg0: i32) -> (i32, i32, i32) {
    %c0_i32 = arith.constant 0 : i32
    %c0_i32_0 = arith.constant 0 : i32
    %c0_i32_1 = arith.constant 0 : i32
    return %arg0, %c0_i32, %c0_i32_0 : i32, i32, i32
  }
  func.func @transform_1(%arg0: i32) -> (i32, i32, i32) {
    %c0_i32 = arith.constant 0 : i32
    %c0_i32_0 = arith.constant 0 : i32
    %c0_i32_1 = arith.constant 0 : i32
    return %arg0, %c0_i32, %c0_i32_0 : i32, i32, i32
  }
  func.func @transform_2(%arg0: i32) -> (i32, i32, i32) {
    %c0_i32 = arith.constant 0 : i32
    %c0_i32_0 = arith.constant 0 : i32
    %c0_i32_1 = arith.constant 0 : i32
    %c0_i32_2 = arith.constant 0 : i32
    return %c0_i32, %c0_i32_0, %c0_i32_1 : i32, i32, i32
  }
  func.func @transform_3(%arg0: i32) -> (i32, i32) {
    %c0_i32 = arith.constant 0 : i32
    %c0_i32_0 = arith.constant 0 : i32
    %c0_i32_1 = arith.constant 0 : i32
    return %c0_i32, %c0_i32_0 : i32, i32
  }
  func.func @transform_4(%arg0: i32) -> (i32, i32, i32) {
    %c0_i32 = arith.constant 0 : i32
    %c0_i32_0 = arith.constant 0 : i32
    %c0_i32_1 = arith.constant 0 : i32
    return %c0_i32, %arg0, %c0_i32_0 : i32, i32, i32
  }
}

</mosaic_0001>

<llo_original>
// kernel: tpu_custom_call.1
$region0: #{tpu_custom_call.1}
  #allocation0 [shape = 'u32[]', space=smem, size = 0x4, offset = 0x4, fixed_abs, tag = 'smem constant byte address 0x4 - core index']
  #allocation1 [shape = 'u32[144,128]{1,0:T(1,128)}', space=vmem, size = 0x12000, scoped, tag = 'internal scratch']
  %s0 = inlined_call_operand.vmem [shape: bf16[2,18,8], index: 0, kind: input, shape index: {}]
  %s1 = inlined_call_operand.vmem [shape: s8[2,16,1], index: 1, kind: input, shape index: {}]
  %s2 = inlined_call_operand.vmem [shape: bf16[3,8,128], index: 2, kind: input, shape index: {}]
  %s3 = inlined_call_operand.vmem [shape: f32[1,128], index: 3, kind: input, shape index: {}]
  %s4 = inlined_call_operand.hbm [shape: f32[3,2,128], index: 4, kind: output, shape index: {}]
  %s5 = sld [smem:[#allocation0]]
  $region26: #{tpu_custom_call.1} parent=0
    _
  %s7 = ssub.s32 1, %s5
  %s8 = scalar_select 0, %s7, %s5
  $region1: #{tpu_custom_call.1} parent=0
    #allocation2 [shape = 'u8[3072]{0}', space=vmem, size = 0xc00, scoped, tag = 'output window, operand 0, single buffered']
    #allocation3 [shape = 's32[1]{0}', space=sflag, size = 0x4, scoped, tag = 'scoped memory for tpu_custom_call.1']
    %9 = vsyncpa [#allocation3], 0
    // Predicated region
    $region2: #{tpu_custom_call.1} parent=1 // pred_check
      _
    $region3: #{tpu_custom_call.1} parent=1 // pred_check_branch
      %11 = sbr.rel (0) target = $region5
    $region4: #{tpu_custom_call.1} parent=1 // pred_region
      _
    $region5: #{tpu_custom_call.1} parent=1 // pred_fallthru
      _
    // Predicated region
    $region6: #{tpu_custom_call.1} parent=1 // pred_check
      _
    $region7: #{tpu_custom_call.1} parent=1 // pred_check_branch
      %13 = sbr.rel (0) target = $region9
    $region8: #{tpu_custom_call.1} parent=1 // pred_region
      _
    $region9: #{tpu_custom_call.1} parent=1 // pred_fallthru
      _
    // Predicated region
    $region10: #{tpu_custom_call.1} parent=1 // pred_check
      _
    $region11: #{tpu_custom_call.1} parent=1 // pred_check_branch
      %15 = sbr.rel (0) target = $region13
    $region12: #{tpu_custom_call.1} parent=1 // pred_region
      _
    $region13: #{tpu_custom_call.1} parent=1 // pred_fallthru
      _
    // Predicated region
    $region14: #{tpu_custom_call.1} parent=1 // pred_check
      _
    $region15: #{tpu_custom_call.1} parent=1 // pred_check_branch
      %17 = sbr.rel (0) target = $region17
    $region16: #{tpu_custom_call.1} parent=1 // pred_region
      _
    $region17: #{tpu_custom_call.1} parent=1 // pred_fallthru
      _
    %v19 = vld [vmem:[%s2] sm:$0xf]
    %v20 = vld [vmem:[%s2 + $0x4] sm:$0xf]
    %v21 = vld [vmem:[%s2 + $0x8] sm:$0xf]
    %v22 = vld [vmem:[%s1] sm:$0x3]
    %v23 = vld [vmem:[%s1 + $0x2] sm:$0x3]
    %v24 = vld [vmem:[%s1 + $0x4] sm:$0x3]
    %v25 = vld [vmem:[%s1 + $0x6] sm:$0x3]
    %v26 = vunpack.c.0.s8 %v22
    %v27 = vunpack.c.0.s8 %v23
    %v28 = vunpack.c.0.s8 %v24
    %v29 = vunpack.c.0.s8 %v25
    %v30 = vld [vmem:[%s0] sm:$0xf]
    %v31 = vld [vmem:[%s0 + $0x4] sm:$0xf]
    %v32 = vld [vmem:[%s0 + $0xc] sm:$0xf]
    %v33 = vld [vmem:[%s0 + $0x10] sm:$0xf]
    %v34 = vld [vmem:[%s0 + $0x8] sm:$0x1]
    %v35 = vld [vmem:[%s0 + $0x14] sm:$0x1]
    %vm36 = vsmask.f32 3328
    %vm37 = vsmask.f32 7440
    %vm38 = vmor %vm36, %vm37
    %v40 = vshrl.u32 %v30, 16
    %v42 = vrot.slane %v40, 4
    %v43 = vshll.u32 %v30, 16
    %v45 = vrot.slane %v43, 5
    %v46 = vor.u32 %v42, %v45
    %v47 = vrot.slane %v46, 4
    %v49 = vshll.u32 %v31, 16
    %v51 = vrot.slane %v49, 5
    %v52 = vsel %vm38, %v47, %v51
    %v53 = vshrl.u32 %v31, 16
    %v55 = vrot.slane %v53, 4
    %v56 = vor.u32 %v55, %v51
    %v57 = vrot.slane %v56, 4
    %v59 = vshll.u32 %v34, 16
    %v61 = vrot.slane %v59, 5
    %v62 = vsel %vm38, %v57, %v61
    %v64 = vshrl.u32 %v32, 16
    %v66 = vrot.slane %v64, 4
    %v67 = vshll.u32 %v32, 16
    %v69 = vrot.slane %v67, 5
    %v70 = vor.u32 %v66, %v69
    %v71 = vrot.slane %v70, 4
    %v73 = vshll.u32 %v33, 16
    %v75 = vrot.slane %v73, 5
    %v76 = vsel %vm38, %v71, %v75
    %v77 = vshrl.u32 %v33, 16
    %v79 = vrot.slane %v77, 4
    %v80 = vor.u32 %v79, %v75
    %v81 = vrot.slane %v80, 4
    %v83 = vshll.u32 %v35, 16
    %v85 = vrot.slane %v83, 5
    %v86 = vsel %vm38, %v81, %v85
    %v87 = vunpack.c.l.b16 %v52
    %v88 = vunpack.c.l.b16 %v62
    %v89 = vunpack.c.l.b16 %v76
    %v90 = vunpack.c.l.b16 %v86
    %v91 = vpack.c.b16 %v88, %v87
    %v92 = vpack.c.b16 %v90, %v89
    %vm93 = vcmask 64512
    %v95 = vsel %vm93, %v91, 0
    %v98 = vsel %vm93, %v92, 0
    %vm100 = vcmask 1043456
    %v102 = vsel %vm100, %v20, 0
    %104 = vmatprep.subr.bf16.mxu0 0
    %105 = vmatpush1.bf16.msra.mxu0 %v102
    %106 = vmatprep.subr.bf16.mxu0 0
    %107 = vmatpush1.bf16.msra.mxu0 0
    %108 = vmatprep.subr.bf16.mxu0 0
    %109 = vmatpush1.bf16.msra.mxu0 0
    %110 = vmatprep.subr.bf16.mxu0 0
    %111 = vmatpush1.bf16.msra.mxu0 0
    %112 = vmatprep.subr.bf16.mxu0 0
    %113 = vmatpush1.bf16.msra.mxu0 0
    %114 = vmatprep.subr.bf16.mxu0 0
    %115 = vmatpush1.bf16.msra.mxu0 0
    %116 = vmatprep.subr.bf16.mxu0 0
    %117 = vmatpush1.bf16.msra.mxu0 0
    %118 = vmatprep.subr.bf16.mxu0 0
    %119 = vmatpush1.bf16.msra.mxu0 0
    %120 = vmatprep.subr.bf16.mxu0 0
    %121 = vmatpush1.bf16.msra.mxu0 0
    %122 = vmatprep.subr.bf16.mxu0 0
    %123 = vmatpush1.bf16.msra.mxu0 0
    %124 = vmatprep.subr.bf16.mxu0 0
    %125 = vmatpush1.bf16.msra.mxu0 0
    %126 = vmatprep.subr.bf16.mxu0 0
    %127 = vmatpush1.bf16.msra.mxu0 0
    %128 = vmatprep.subr.bf16.mxu0 0
    %129 = vmatpush1.bf16.msra.mxu0 0
    %130 = vmatprep.subr.bf16.mxu0 0
    %131 = vmatpush1.bf16.msra.mxu0 0
    %132 = vmatprep.subr.bf16.mxu0 0
    %133 = vmatpush1.bf16.msra.mxu0 0
    %134 = vmatprep.subr.bf16.mxu0 0
    %135 = vmatpush1.bf16.msra.mxu0 0
    %136 = vmatprep.mubr.bf16.mxu0 0
    %137 = vmatmul.mubr.bf16.gmra.mrb[0].mxu0 %v95
    %v138 = vpop.f32.mrb[0].mxu0
    %v139 = vadd.f32 0.0, %v138
    %v140 = vpop.f32.mrb[0].mxu0
    %v141 = vpop.f32.mrb[0].mxu0
    %v142 = vadd.f32 0.0, %v141
    %v143 = vpop.f32.mrb[0].mxu0
    %144 = vmatprep.mubr.bf16.mxu0 0
    %145 = vmatmul.mubr.bf16.gmra.mrb[0].mxu0 %v98
    %v146 = vpop.f32.mrb[0].mxu0
    %v147 = vadd.f32 0.0, %v146
    %v148 = vpop.f32.mrb[0].mxu0
    %v149 = vpop.f32.mrb[0].mxu0
    %v150 = vadd.f32 0.0, %v149
    %v151 = vpop.f32.mrb[0].mxu0
    %152 = vdwg.mxu0
    %v157 = vunpack.c.l.b16 %v30
    %v158 = vunpack.c.l.b16 %v31
    %v159 = vunpack.c.l.b16 %v32
    %v160 = vunpack.c.l.b16 %v33
    %v161 = vpack.c.b16 %v158, %v157
    %v162 = vpack.c.b16 %v160, %v159
    %v164 = vsel %vm93, %v161, 0
    %v167 = vsel %vm93, %v162, 0
    %v170 = vsel %vm100, %v19, 0
    %172 = vmatprep.subr.bf16.mxu0 0
    %173 = vmatpush1.bf16.msra.mxu0 %v170
    %174 = vmatprep.subr.bf16.mxu0 0
    %175 = vmatpush1.bf16.msra.mxu0 0
    %176 = vmatprep.subr.bf16.mxu0 0
    %177 = vmatpush1.bf16.msra.mxu0 0
    %178 = vmatprep.subr.bf16.mxu0 0
    %179 = vmatpush1.bf16.msra.mxu0 0
    %180 = vmatprep.subr.bf16.mxu0 0
    %181 = vmatpush1.bf16.msra.mxu0 0
    %182 = vmatprep.subr.bf16.mxu0 0
    %183 = vmatpush1.bf16.msra.mxu0 0
    %184 = vmatprep.subr.bf16.mxu0 0
    %185 = vmatpush1.bf16.msra.mxu0 0
    %186 = vmatprep.subr.bf16.mxu0 0
    %187 = vmatpush1.bf16.msra.mxu0 0
    %188 = vmatprep.subr.bf16.mxu0 0
    %189 = vmatpush1.bf16.msra.mxu0 0
    %190 = vmatprep.subr.bf16.mxu0 0
    %191 = vmatpush1.bf16.msra.mxu0 0
    %192 = vmatprep.subr.bf16.mxu0 0
    %193 = vmatpush1.bf16.msra.mxu0 0
    %194 = vmatprep.subr.bf16.mxu0 0
    %195 = vmatpush1.bf16.msra.mxu0 0
    %196 = vmatprep.subr.bf16.mxu0 0
    %197 = vmatpush1.bf16.msra.mxu0 0
    %198 = vmatprep.subr.bf16.mxu0 0
    %199 = vmatpush1.bf16.msra.mxu0 0
    %200 = vmatprep.subr.bf16.mxu0 0
    %201 = vmatpush1.bf16.msra.mxu0 0
    %202 = vmatprep.subr.bf16.mxu0 0
    %203 = vmatpush1.bf16.msra.mxu0 0
    %204 = vmatprep.mubr.bf16.mxu0 0
    %205 = vmatmul.mubr.bf16.gmra.mrb[0].mxu0 %v164
    %v206 = vpop.f32.mrb[0].mxu0
    %v207 = vadd.f32 %v139, %v206
    %v208 = vpop.f32.mrb[0].mxu0
    %v209 = vpop.f32.mrb[0].mxu0
    %v210 = vadd.f32 %v142, %v209
    %v211 = vpop.f32.mrb[0].mxu0
    %212 = vmatprep.mubr.bf16.mxu0 0
    %213 = vmatmul.mubr.bf16.gmra.mrb[0].mxu0 %v167
    %v214 = vpop.f32.mrb[0].mxu0
    %v215 = vadd.f32 %v147, %v214
    %v216 = vpop.f32.mrb[0].mxu0
    %v217 = vpop.f32.mrb[0].mxu0
    %v218 = vadd.f32 %v150, %v217
    %v219 = vpop.f32.mrb[0].mxu0
    %220 = vdwg.mxu0
    %v221 = vld [vmem:[%s0] sm:$0xe]
    %v222 = vld [vmem:[%s0 + $0xc] sm:$0xe]
    %vm227 = vcmask 1042432
    %vm228 = vcmask 1046532
    %vm229 = vmor %vm227, %vm228
    %v230 = vrot.slane %v221, 5
    %v231 = vrot.slane %v230, 4
    %v232 = vrot.slane %v31, 5
    %v233 = vsel %vm229, %v231, %v232
    %v234 = vrot.slane %v232, 4
    %v235 = vrot.slane %v34, 5
    %v236 = vsel %vm229, %v234, %v235
    %v237 = vrot.slane %v222, 5
    %v238 = vrot.slane %v237, 4
    %v239 = vrot.slane %v33, 5
    %v240 = vsel %vm229, %v238, %v239
    %v241 = vrot.slane %v239, 4
    %v242 = vrot.slane %v35, 5
    %v243 = vsel %vm229, %v241, %v242
    %v244 = vunpack.c.l.b16 %v233
    %v245 = vunpack.c.l.b16 %v236
    %v246 = vunpack.c.l.b16 %v240
    %v247 = vunpack.c.l.b16 %v243
    %v248 = vpack.c.b16 %v245, %v244
    %v249 = vpack.c.b16 %v247, %v246
    %v251 = vsel %vm93, %v248, 0
    %v254 = vsel %vm93, %v249, 0
    %v257 = vsel %vm100, %v21, 0
    %259 = vmatprep.subr.bf16.mxu0 0
    %260 = vmatpush1.bf16.msra.mxu0 %v257
    %261 = vmatprep.subr.bf16.mxu0 0
    %262 = vmatpush1.bf16.msra.mxu0 0
    %263 = vmatprep.subr.bf16.mxu0 0
    %264 = vmatpush1.bf16.msra.mxu0 0
    %265 = vmatprep.subr.bf16.mxu0 0
    %266 = vmatpush1.bf16.msra.mxu0 0
    %267 = vmatprep.subr.bf16.mxu0 0
    %268 = vmatpush1.bf16.msra.mxu0 0
    %269 = vmatprep.subr.bf16.mxu0 0
    %270 = vmatpush1.bf16.msra.mxu0 0
    %271 = vmatprep.subr.bf16.mxu0 0
    %272 = vmatpush1.bf16.msra.mxu0 0
    %273 = vmatprep.subr.bf16.mxu0 0
    %274 = vmatpush1.bf16.msra.mxu0 0
    %275 = vmatprep.subr.bf16.mxu0 0
    %276 = vmatpush1.bf16.msra.mxu0 0
    %277 = vmatprep.subr.bf16.mxu0 0
    %278 = vmatpush1.bf16.msra.mxu0 0
    %279 = vmatprep.subr.bf16.mxu0 0
    %280 = vmatpush1.bf16.msra.mxu0 0
    %281 = vmatprep.subr.bf16.mxu0 0
    %282 = vmatpush1.bf16.msra.mxu0 0
    %283 = vmatprep.subr.bf16.mxu0 0
    %284 = vmatpush1.bf16.msra.mxu0 0
    %285 = vmatprep.subr.bf16.mxu0 0
    %286 = vmatpush1.bf16.msra.mxu0 0
    %287 = vmatprep.subr.bf16.mxu0 0
    %288 = vmatpush1.bf16.msra.mxu0 0
    %289 = vmatprep.subr.bf16.mxu0 0
    %290 = vmatpush1.bf16.msra.mxu0 0
    %291 = vmatprep.mubr.bf16.mxu0 0
    %292 = vmatmul.mubr.bf16.gmra.mrb[0].mxu0 %v251
    %v293 = vpop.f32.mrb[0].mxu0
    %v294 = vadd.f32 0.0, %v293
    %v295 = vpop.f32.mrb[0].mxu0
    %v296 = vpop.f32.mrb[0].mxu0
    %v297 = vadd.f32 0.0, %v296
    %v298 = vpop.f32.mrb[0].mxu0
    %299 = vmatprep.mubr.bf16.mxu0 0
    %300 = vmatmul.mubr.bf16.gmra.mrb[0].mxu0 %v254
    %v301 = vpop.f32.mrb[0].mxu0
    %v302 = vadd.f32 0.0, %v301
    %v303 = vpop.f32.mrb[0].mxu0
    %v304 = vpop.f32.mrb[0].mxu0
    %v305 = vadd.f32 0.0, %v304
    %v306 = vpop.f32.mrb[0].mxu0
    %307 = vdwg.mxu0
    %v308 = vadd.f32 %v207, %v294
    %v309 = vadd.f32 %v210, %v297
    %v310 = vadd.f32 %v215, %v302
    %v311 = vadd.f32 %v218, %v305
    %vm312 = vcmp.eq.s32.totalorder %v26, 1
    %vm313 = vcmp.eq.s32.totalorder %v27, 1
    %vm314 = vcmp.eq.s32.totalorder %v28, 1
    %vm315 = vcmp.eq.s32.totalorder %v29, 1
    %v316 = vsel %vm312, 1, 0
    %v317 = vsel %vm313, 1, 0
    %v318 = vsel %vm314, 1, 0
    %v319 = vsel %vm315, 1, 0
    %320 = vset.pattern.permute.xlu0 0
    %321 = vperm.xlu0 %320, %v316
    %v322 = vpop.permute.xlu0 %321
    %323 = vset.pattern.permute.xlu0 0
    %324 = vperm.xlu0 %323, %v317
    %v325 = vpop.permute.xlu0 %324
    %326 = vset.pattern.permute.xlu0 0
    %327 = vperm.xlu0 %326, %v318
    %v328 = vpop.permute.xlu0 %327
    %329 = vset.pattern.permute.xlu0 0
    %330 = vperm.xlu0 %329, %v319
    %v331 = vpop.permute.xlu0 %330
    %vm332 = vcmp.eq.s32.totalorder %v322, 1
    %vm333 = vcmp.eq.s32.totalorder %v325, 1
    %vm334 = vcmp.eq.s32.totalorder %v328, 1
    %vm335 = vcmp.eq.s32.totalorder %v331, 1
    %v336 = vsel %vm332, %v308, -1e+30
    %v337 = vsel %vm333, %v309, -1e+30
    %v338 = vsel %vm334, %v310, -1e+30
    %v339 = vsel %vm335, %v311, -1e+30
    %v340 = vmax.f32 %v336, %v337
    %v341 = vrot.slane %v340, 4
    %v342 = vmax.f32 %v340, %v341
    %v343 = vrot.slane %v342, 2
    %v344 = vmax.f32 %v342, %v343
    %v345 = vrot.slane %v344, 1
    %v346 = vmax.f32 %v344, %v345
    %v347 = vmax.f32 %v338, %v339
    %v348 = vrot.slane %v347, 4
    %v349 = vmax.f32 %v347, %v348
    %v350 = vrot.slane %v349, 2
    %v351 = vmax.f32 %v349, %v350
    %v352 = vrot.slane %v351, 1
    %v353 = vmax.f32 %v351, %v352
    %v354 = vmax.f32 %v346, -1e+30
    %v355 = vmax.f32 %v353, -1e+30
    %vm356 = vcmp.eq.s32.totalorder %v26, 2
    %vm357 = vcmp.eq.s32.totalorder %v27, 2
    %vm358 = vcmp.eq.s32.totalorder %v28, 2
    %vm359 = vcmp.eq.s32.totalorder %v29, 2
    %v360 = vsel %vm356, 1, 0
    %v361 = vsel %vm357, 1, 0
    %v362 = vsel %vm358, 1, 0
    %v363 = vsel %vm359, 1, 0
    %364 = vset.pattern.permute.xlu0 0
    %365 = vperm.xlu0 %364, %v360
    %v366 = vpop.permute.xlu0 %365
    %367 = vset.pattern.permute.xlu0 0
    %368 = vperm.xlu0 %367, %v361
    %v369 = vpop.permute.xlu0 %368
    %370 = vset.pattern.permute.xlu0 0
    %371 = vperm.xlu0 %370, %v362
    %v372 = vpop.permute.xlu0 %371
    %373 = vset.pattern.permute.xlu0 0
    %374 = vperm.xlu0 %373, %v363
    %v375 = vpop.permute.xlu0 %374
    %vm376 = vcmp.eq.s32.totalorder %v366, 1
    %vm377 = vcmp.eq.s32.totalorder %v369, 1
    %vm378 = vcmp.eq.s32.totalorder %v372, 1
    %vm379 = vcmp.eq.s32.totalorder %v375, 1
    %v380 = vsel %vm376, %v308, -1e+30
    %v381 = vsel %vm377, %v309, -1e+30
    %v382 = vsel %vm378, %v310, -1e+30
    %v383 = vsel %vm379, %v311, -1e+30
    %v384 = vmax.f32 %v380, %v381
    %v385 = vrot.slane %v384, 4
    %v386 = vmax.f32 %v384, %v385
    %v387 = vrot.slane %v386, 2
    %v388 = vmax.f32 %v386, %v387
    %v389 = vrot.slane %v388, 1
    %v390 = vmax.f32 %v388, %v389
    %v391 = vmax.f32 %v382, %v383
    %v392 = vrot.slane %v391, 4
    %v393 = vmax.f32 %v391, %v392
    %v394 = vrot.slane %v393, 2
    %v395 = vmax.f32 %v393, %v394
    %v396 = vrot.slane %v395, 1
    %v397 = vmax.f32 %v395, %v396
    %v398 = vmax.f32 %v390, -1e+30
    %v399 = vmax.f32 %v397, -1e+30
    %vm400 = vcmp.eq.s32.totalorder %v26, 3
    %vm401 = vcmp.eq.s32.totalorder %v27, 3
    %vm402 = vcmp.eq.s32.totalorder %v28, 3
    %vm403 = vcmp.eq.s32.totalorder %v29, 3
    %v404 = vsel %vm400, 1, 0
    %v405 = vsel %vm401, 1, 0
    %v406 = vsel %vm402, 1, 0
    %v407 = vsel %vm403, 1, 0
    %408 = vset.pattern.permute.xlu0 0
    %409 = vperm.xlu0 %408, %v404
    %v410 = vpop.permute.xlu0 %409
    %411 = vset.pattern.permute.xlu0 0
    %412 = vperm.xlu0 %411, %v405
    %v413 = vpop.permute.xlu0 %412
    %414 = vset.pattern.permute.xlu0 0
    %415 = vperm.xlu0 %414, %v406
    %v416 = vpop.permute.xlu0 %415
    %417 = vset.pattern.permute.xlu0 0
    %418 = vperm.xlu0 %417, %v407
    %v419 = vpop.permute.xlu0 %418
    %vm420 = vcmp.eq.s32.totalorder %v410, 1
    %vm421 = vcmp.eq.s32.totalorder %v413, 1
    %vm422 = vcmp.eq.s32.totalorder %v416, 1
    %vm423 = vcmp.eq.s32.totalorder %v419, 1
    %v424 = vsel %vm420, %v308, -1e+30
    %v425 = vsel %vm421, %v309, -1e+30
    %v426 = vsel %vm422, %v310, -1e+30
    %v427 = vsel %vm423, %v311, -1e+30
    %v428 = vmax.f32 %v424, %v425
    %v429 = vrot.slane %v428, 4
    %v430 = vmax.f32 %v428, %v429
    %v431 = vrot.slane %v430, 2
    %v432 = vmax.f32 %v430, %v431
    %v433 = vrot.slane %v432, 1
    %v434 = vmax.f32 %v432, %v433
    %v435 = vmax.f32 %v426, %v427
    %v436 = vrot.slane %v435, 4
    %v437 = vmax.f32 %v435, %v436
    %v438 = vrot.slane %v437, 2
    %v439 = vmax.f32 %v437, %v438
    %v440 = vrot.slane %v439, 1
    %v441 = vmax.f32 %v439, %v440
    %v442 = vmax.f32 %v434, -1e+30
    %v443 = vmax.f32 %v441, -1e+30
    %v444 = vld [vmem:[%s3] sm:$0x1]
    %v446 = vlaneseq
    %v447 = vshrl.u32 %v446, 7
    %v448 = vsub.s32 0, %v447
    %v449 = vrot.slane %v444, %v448
    %v451 = vadd.f32 %v354, %v449
    %v452 = vadd.f32 %v355, %v449
    %v453 = vtanh.pop %v451
    %v454 = vtanh.pop %v452
    %v457 = vrot.slane %v454, 7
    %vm458 = vcmask 1041409
    %v459 = vsel %vm458, %v457, %v453
    %461 = vst [vmem:[#allocation2] sm:$0x3] %v459
    %v462 = vadd.f32 %v398, %v449
    %v463 = vadd.f32 %v399, %v449
    %v464 = vtanh.pop %v462
    %v465 = vtanh.pop %v463
    %v468 = vrot.slane %v465, 7
    %v469 = vsel %vm458, %v468, %v464
    %s471 = scalar_lea.vmem [#allocation2], 2
    %472 = vst [vmem:[%s471] sm:$0x3] %v469
    %v473 = vadd.f32 %v442, %v449
    %v474 = vadd.f32 %v443, %v449
    %v475 = vtanh.pop %v473
    %v476 = vtanh.pop %v474
    %v479 = vrot.slane %v476, 7
    %v480 = vsel %vm458, %v479, %v475
    %s482 = scalar_lea.vmem [#allocation2], 4
    %483 = vst [vmem:[%s482] sm:$0x3] %v480
    // Predicated region
    $region18: #{tpu_custom_call.1} parent=1 // pred_check
      _
    $region19: #{tpu_custom_call.1} parent=1 // pred_check_branch
      %485 = sbr.rel (0) target = $region21
    $region20: #{tpu_custom_call.1} parent=1 // pred_region
      %s487 = ssub.s32 96, 96
      %488 = vsyncadd [#allocation3], %s487
      %s489 = sshll.u32 [#allocation2], 4
      %s490 = int_to_ptr.vmem [resolvable:$true] %s489
      %495 = dma.vmem_to_hbm [thread:$0]  %s490, 96, %s4, [#allocation3], 32, 32, 2
    $region21: #{tpu_custom_call.1} parent=1 // pred_fallthru
      _
    // Predicated region
    $region22: #{tpu_custom_call.1} parent=1 // pred_check
      _
    $region23: #{tpu_custom_call.1} parent=1 // pred_check_branch
      %497 = sbr.rel (0) target = $region25
    $region24: #{tpu_custom_call.1} parent=1 // pred_region
      %498 = dma.done [#allocation3], 96
    $region25: #{tpu_custom_call.1} parent=1 // pred_fallthru
      _
    %499 = vsyncpa [#allocation3], 1

</llo_original>
